<compile_context>
chip_gen: v5e
topology: v5e:2x2
jax: 0.10.0
libtpu: 0.0.40
codegen_flags: <defaults>
</compile_context>

<pallas_src>
import functools

import jax
import jax.numpy as jnp
from jax import lax
from jax.experimental import pallas as pl
from jax.experimental.pallas import tpu as pltpu


def _attention_mask_kernel(mask_col_ref, mask_row_ref, o_ref):
    # mask_col_ref: (1, ti, 1)  -- validity of the query rows in this tile
    # mask_row_ref: (1, 1, S)   -- validity of all key columns
    # o_ref       : (1, ti, S)  -- float32 attention-mask tile
    ti = o_ref.shape[1]
    S = o_ref.shape[2]
    i_blk = pl.program_id(1)

    row_valid = mask_col_ref[...] != 0               # (1, ti, 1) bool
    col_valid = mask_row_ref[...] != 0               # (1, 1, S)  bool

    # Global row / column indices for the causal (lower-triangular) part.
    i_idx = lax.broadcasted_iota(jnp.int32, (1, ti, S), 1) + i_blk * ti
    j_idx = lax.broadcasted_iota(jnp.int32, (1, ti, S), 2)
    causal = j_idx <= i_idx

    keep = jnp.logical_and(jnp.logical_and(row_valid, col_valid), causal)
    o_ref[...] = jnp.where(keep, jnp.float32(1.0), jnp.float32(0.0))


@functools.partial(jax.jit, static_argnames=("block_rows",))
def attention_mask(input_mask, *, block_rows=256):
    """input_mask: [B, S] (any numeric dtype; nonzero == valid). Returns [B, S, S] f32."""
    B, S = input_mask.shape
    if input_mask.dtype == jnp.bool_:
        input_mask = input_mask.astype(jnp.int32)

    # Row-tile size: as large as possible (fewer grid steps, bigger lane-dense stores);
    # must be a multiple of 8 sublanes when it does not cover the whole sequence.
    ti = min(block_rows, S)
    if ti < S:
        ti = max(8, (ti // 8) * 8)
    grid = (B, pl.cdiv(S, ti))

    mask_col = input_mask.reshape(B, S, 1)   # query-row validity (sublane axis)
    mask_row = input_mask.reshape(B, 1, S)   # key-column validity (lane axis)

    return pl.pallas_call(
        _attention_mask_kernel,
        out_shape=jax.ShapeDtypeStruct((B, S, S), jnp.float32),
        grid_spec=pltpu.PrefetchScalarGridSpec(
            num_scalar_prefetch=0,
            grid=grid,
            in_specs=[
                pl.BlockSpec((1, ti, 1), lambda b, i: (b, i, 0)),
                pl.BlockSpec((1, 1, S), lambda b, i: (b, 0, 0)),
            ],
            out_specs=pl.BlockSpec((1, ti, S), lambda b, i: (b, i, 0)),
        ),
        compiler_params=pltpu.CompilerParams(
            dimension_semantics=("parallel", "parallel"),
            vmem_limit_bytes=64 * 1024 * 1024,
        ),
    )(mask_col, mask_row)


def _reference(input_mask):
    B, S = input_mask.shape
    m = (input_mask != 0).astype(jnp.float32)
    att = m.reshape(B, S, 1) * m.reshape(B, 1, S)      # == bmm(left, right)
    tril = jnp.tril(jnp.ones((S, S), jnp.float32))
    return att * tril[None]


if __name__ == "__main__":
    key = jax.random.PRNGKey(0)
    k1, k2 = jax.random.split(key)

    # Small shape consistent with the module: batch=2, seq_length=8.
    mask_small = jax.random.bernoulli(k1, 0.7, (2, 8)).astype(jnp.int32)
    out_small = jax.block_until_ready(attention_mask(mask_small, block_rows=256))
    ref_small = _reference(mask_small)
    assert out_small.shape == (2, 8, 8)
    assert jnp.allclose(out_small, ref_small, atol=0.0, rtol=0.0), "mismatch (small)"

    # Tiled path: seq=384 with 128-row tiles -> grid (2, 3).
    mask_big = jax.random.bernoulli(k2, 0.6, (2, 384)).astype(jnp.int32)
    out_big = jax.block_until_ready(attention_mask(mask_big, block_rows=128))
    ref_big = _reference(mask_big)
    assert out_big.shape == (2, 384, 384)
    assert jnp.allclose(out_big, ref_big, atol=0.0, rtol=0.0), "mismatch (tiled)"

    print("KERNEL_OK")
</pallas_src>

<mosaic_0001>
module attributes {stable_mosaic.version = 11 : i64} {
  func.func @_attention_mask_kernel(%arg0: i32, %arg1: i32, %arg2: memref<1x8x1xi32, #tpu.memory_space<vmem>>, %arg3: memref<1x1x8xi32, #tpu.memory_space<vmem>>, %arg4: memref<1x8x8xf32, #tpu.memory_space<vmem>>) attributes {dimension_semantics = [#tpu.dimension_semantics<parallel>, #tpu.dimension_semantics<parallel>], iteration_bounds = array<i64: 2, 1>, scalar_prefetch = 0 : i64, scratch_operands = 0 : i64, tpu.core_type = #tpu.core_type<tc>, window_params = [{transform_indices = @transform_0, window_bounds = array<i64: 1, 8, 1>}, {transform_indices = @transform_1, window_bounds = array<i64: 1, 1, 8>}, {transform_indices = @transform_2, window_bounds = array<i64: 1, 8, 8>}]} {
    %c0 = arith.constant 0 : index
    %c0_0 = arith.constant 0 : index
    %c0_1 = arith.constant 0 : index
    %0 = vector.load %arg2[%c0, %c0_0, %c0_1] : memref<1x8x1xi32, #tpu.memory_space<vmem>>, vector<1x8x1xi32>
    %c0_i32 = arith.constant 0 : i32
    %1 = vector.broadcast %c0_i32 : i32 to vector<1x8x1xi32>
    %2 = arith.cmpi ne, %0, %1 : vector<1x8x1xi32>
    %c0_2 = arith.constant 0 : index
    %c0_3 = arith.constant 0 : index
    %c0_4 = arith.constant 0 : index
    %3 = vector.load %arg3[%c0_2, %c0_3, %c0_4] : memref<1x1x8xi32, #tpu.memory_space<vmem>>, vector<1x1x8xi32>
    %c0_i32_5 = arith.constant 0 : i32
    %4 = vector.broadcast %c0_i32_5 : i32 to vector<1x1x8xi32>
    %5 = arith.cmpi ne, %3, %4 : vector<1x1x8xi32>
    %6 = tpu.iota {dimensions = array<i32: 1>} : vector<1x8x8xi32>
    %c8_i32 = arith.constant 8 : i32
    %7 = arith.muli %arg1, %c8_i32 : i32
    %8 = vector.broadcast %7 : i32 to vector<1x8x8xi32>
    %9 = arith.addi %6, %8 : vector<1x8x8xi32>
    %10 = tpu.iota {dimensions = array<i32: 2>} : vector<1x8x8xi32>
    %11 = arith.cmpi sle, %10, %9 : vector<1x8x8xi32>
    %12 = vector.broadcast %2 : vector<1x8x1xi1> to vector<1x8x8xi1>
    %13 = vector.broadcast %5 : vector<1x1x8xi1> to vector<1x8x8xi1>
    %14 = arith.andi %12, %13 : vector<1x8x8xi1>
    %15 = arith.andi %14, %11 : vector<1x8x8xi1>
    %cst = arith.constant 1.000000e+00 : f32
    %cst_6 = arith.constant 0.000000e+00 : f32
    %16 = vector.broadcast %cst : f32 to vector<1x8x8xf32>
    %17 = vector.broadcast %cst_6 : f32 to vector<1x8x8xf32>
    %18 = arith.select %15, %16, %17 : vector<1x8x8xi1>, vector<1x8x8xf32>
    %c0_7 = arith.constant 0 : index
    %c0_8 = arith.constant 0 : index
    %c0_9 = arith.constant 0 : index
    %19 = vector.load %arg4[%c0_7, %c0_8, %c0_9] : memref<1x8x8xf32, #tpu.memory_space<vmem>>, vector<1x8x8xf32>
    tpu.vector_store %arg4[%c0_7, %c0_8, %c0_9], %18 {strides = array<i32>} : memref<1x8x8xf32, #tpu.memory_space<vmem>>, vector<1x8x8xf32>,
    return
  }
  func.func @transform_0(%arg0: i32, %arg1: i32) -> (i32, i32, i32) {
    %c0_i32 = arith.constant 0 : i32
    %c0_i32_0 = arith.constant 0 : i32
    return %arg0, %arg1, %c0_i32 : i32, i32, i32
  }
  func.func @transform_1(%arg0: i32, %arg1: i32) -> (i32, i32, i32) {
    %c0_i32 = arith.constant 0 : i32
    %c0_i32_0 = arith.constant 0 : i32
    %c0_i32_1 = arith.constant 0 : i32
    return %arg0, %c0_i32, %c0_i32_0 : i32, i32, i32
  }
  func.func @transform_2(%arg0: i32, %arg1: i32) -> (i32, i32, i32) {
    %c0_i32 = arith.constant 0 : i32
    %c0_i32_0 = arith.constant 0 : i32
    return %arg0, %arg1, %c0_i32 : i32, i32, i32
  }
}

</mosaic_0001>

<llo_original>
// kernel: attention_mask.1
$region0: #{attention_mask.1}
  #allocation0 [shape = 'u32[]', space=smem, size = 0x4, offset = 0x4, fixed_abs, tag = 'smem constant byte address 0x4 - core index']
  #allocation1 [shape = 'u32[72,128]{1,0:T(1,128)}', space=vmem, size = 0x9000, scoped, tag = 'internal scratch']
  %s0 = inlined_call_operand.vmem [shape: s32[2,8,1], index: 0, kind: input, shape index: {}]
  %s1 = inlined_call_operand.vmem [shape: s32[2,1,8], index: 1, kind: input, shape index: {}]
  %s2 = inlined_call_operand.hbm [shape: f32[2,8,8], index: 2, kind: output, shape index: {}]
  %s3 = sld [smem:[#allocation0]]
  $region41: #{attention_mask.1} parent=0
    _
  %s5 = ssub.s32 1, %s3
  %s6 = scalar_select 0, %s5, %s3
  $region1: #{attention_mask.1} parent=0
    #allocation2 [shape = 'u8[8192]{0}', space=vmem, size = 0x2000, scoped, tag = 'output window, operand 0']
    #allocation3 [shape = 's32[2]{0}', space=sflag, size = 0x8, scoped, tag = 'scoped memory for attention_mask.1']
    %7 = vsyncpa [#allocation3], 0
    %s8 = scalar_lea.sflag [#allocation3], 1
    %9 = vsyncpa %s8, 0
    loop: start=0, step=1, limit=4
    $region2: #{attention_mask.1} parent=1 // loop_pre_header
      _
    $region3: #{attention_mask.1} parent=1 // loop_header
      %s11 = sphi 0, %s15
      %p12 = scmp.ge.s32.totalorder %s11, 4
      %s18 = sphi 0, %s30
      %s19 = sphi 0, %s26
      %s20 = sphi 0, %s18
      %s21 = sphi 0, %s19
      %s22 = sphi 0, %s20
      %s23 = sphi 0, %s21
      %s35 = sphi 0, %s37
      %s38 = sphi 0, %s35
      %s39 = sphi 0, %s38
      %s55 = sphi 0, %s39
      %s61 = sphi 0, %s63
      %s64 = sphi 0, %s61
      %s65 = sphi 0, %s64
      %s81 = sphi 0, %s65
      %s89 = sphi 0, %s91
      %s92 = sphi 0, %s89
      %s93 = sphi 0, %s92
      %s109 = sphi 0, %s93
    $region4: #{attention_mask.1} parent=1 // loop_header_branch
      %14 = sbr.rel (%p12) target = $region8
    $region5: #{attention_mask.1} parent=1 // loop_body
      %s16 = ssub.s32 %s11, 1
      %s17 = ssub.s32 %s11, 2
      %s24 = sadd.s32 1, %s19
      %p25 = scmp.ge.s32.totalorder %s24, 1
      %s26 = scalar_select %p25, 0, %s24
      %s27 = sadd.s32 1, %s18
      %s28 = scalar_select %p25, %s27, %s18
      %p29 = scmp.ge.s32.totalorder %s28, 2
      %s30 = scalar_select %p29, 0, %s28
      %s31 = ssub.s32 %s18, %s30
      %s32 = ssub.s32 %s19, %s26
      %s33 = sor.u32 %s31, %s32
      %p34 = scmp.eq.s32.totalorder %s33, 0
      %s36 = sadd.s32 %s35, 1
      %s37 = scalar_select %p34, %s35, %s36
      %p40 = pneg %p34
      %p41 = scmp.eq.s32.totalorder %s11, 1
      %p42 = por %p40, %p41
      %p43 = scmp.ne.s32.totalorder %s35, %s38
      %p44 = scmp.eq.s32.totalorder %s11, 0
      %p45 = por %p43, %p44
      %p46 = scmp.ne.s32.totalorder %s35, %s38
      %p47 = scmp.eq.s32.totalorder %s16, 1
      %p48 = por %p46, %p47
      %p49 = scmp.ne.s32.totalorder %s38, %s39
      %p50 = scmp.eq.s32.totalorder %s16, 0
      %p51 = por %p49, %p50
      %p52 = scmp.ne.s32.totalorder %s38, %s39
      %p53 = scmp.eq.s32.totalorder %s17, 1
      %p54 = por %p52, %p53
      %p56 = scmp.ne.s32.totalorder %s39, %s55
      %p57 = scmp.eq.s32.totalorder %s17, 0
      %p58 = por %p56, %p57
      %s59 = ssub.s32 %s18, %s30
      %p60 = scmp.eq.s32.totalorder %s59, 0
      %s62 = sadd.s32 %s61, 1
      %s63 = scalar_select %p60, %s61, %s62
      %p66 = pneg %p60
      %p67 = scmp.eq.s32.totalorder %s11, 1
      %p68 = por %p66, %p67
      %p69 = scmp.ne.s32.totalorder %s61, %s64
      %p70 = scmp.eq.s32.totalorder %s11, 0
      %p71 = por %p69, %p70
      %p72 = scmp.ne.s32.totalorder %s61, %s64
      %p73 = scmp.eq.s32.totalorder %s16, 1
      %p74 = por %p72, %p73
      %p75 = scmp.ne.s32.totalorder %s64, %s65
      %p76 = scmp.eq.s32.totalorder %s16, 0
      %p77 = por %p75, %p76
      %p78 = scmp.ne.s32.totalorder %s64, %s65
      %p79 = scmp.eq.s32.totalorder %s17, 1
      %p80 = por %p78, %p79
      %p82 = scmp.ne.s32.totalorder %s65, %s81
      %p83 = scmp.eq.s32.totalorder %s17, 0
      %p84 = por %p82, %p83
      %s85 = ssub.s32 %s18, %s30
      %s86 = ssub.s32 %s19, %s26
      %s87 = sor.u32 %s85, %s86
      %p88 = scmp.eq.s32.totalorder %s87, 0
      %s90 = sadd.s32 %s89, 1
      %s91 = scalar_select %p88, %s89, %s90
      %p94 = pneg %p88
      %p95 = scmp.eq.s32.totalorder %s11, 1
      %p96 = por %p94, %p95
      %p97 = scmp.ne.s32.totalorder %s89, %s92
      %p98 = scmp.eq.s32.totalorder %s11, 0
      %p99 = por %p97, %p98
      %p100 = scmp.ne.s32.totalorder %s89, %s92
      %p101 = scmp.eq.s32.totalorder %s16, 1
      %p102 = por %p100, %p101
      %p103 = scmp.ne.s32.totalorder %s92, %s93
      %p104 = scmp.eq.s32.totalorder %s16, 0
      %p105 = por %p103, %p104
      %p106 = scmp.ne.s32.totalorder %s92, %s93
      %p107 = scmp.eq.s32.totalorder %s17, 1
      %p108 = por %p106, %p107
      %p110 = scmp.ne.s32.totalorder %s93, %s109
      %p111 = scmp.eq.s32.totalorder %s17, 0
      %p112 = por %p110, %p111
      %p113 = scmp.le.s32.totalorder 1, %s11
      %p114 = scmp.lt.s32.totalorder %s11, 3
      %p115 = pnand %p113, %p114
      %p116 = pneg %p115
      // Predicated region
      $region9: #{attention_mask.1} parent=5 // pred_check
        _
      $region10: #{attention_mask.1} parent=5 // pred_check_branch
        %118 = sbr.rel (%p115) target = $region12
      $region11: #{attention_mask.1} parent=5 // pred_region
        %s119 = ssub.s32 %s11, 1
      $region12: #{attention_mask.1} parent=5 // pred_fallthru
        _
      %p120 = scmp.lt.s32.totalorder %s11, 2
      // Predicated region
      $region13: #{attention_mask.1} parent=5 // pred_check
        %p121 = pneg %p120
      $region14: #{attention_mask.1} parent=5 // pred_check_branch
        %123 = sbr.rel (%p121) target = $region16
      $region15: #{attention_mask.1} parent=5 // pred_region
        // Predicated region
        $region17: #{attention_mask.1} parent=15 // pred_check
          %p124 = pneg %p45
        $region18: #{attention_mask.1} parent=15 // pred_check_branch
          %126 = sbr.rel (%p124) target = $region20
        $region19: #{attention_mask.1} parent=15 // pred_region
          %p127 = scmp.lt.s32.totalorder %s18, 1
          %s128 = scalar_select %p127, %s18, 1
          %p129 = scmp.lt.s32.totalorder %s19, 0
          %s130 = scalar_select %p129, %s19, 0
          %s131 = sadd.s32 %s130, %s128
          %s132 = smul.addr %s131, 8
          %s133 = scalar_lea.vmem %s0, %s132
        $region20: #{attention_mask.1} parent=15 // pred_fallthru
          _
        // Predicated region
        $region21: #{attention_mask.1} parent=15 // pred_check
          %p134 = pneg %p71
        $region22: #{attention_mask.1} parent=15 // pred_check_branch
          %136 = sbr.rel (%p134) target = $region24
        $region23: #{attention_mask.1} parent=15 // pred_region
          %p137 = scmp.lt.s32.totalorder %s18, 1
          %s138 = scalar_select %p137, %s18, 1
          %s139 = scalar_lea.vmem %s1, %s138
        $region24: #{attention_mask.1} parent=15 // pred_fallthru
          _
      $region16: #{attention_mask.1} parent=5 // pred_fallthru
        _
      %p140 = scmp.le.s32.totalorder 1, %s11
      %p141 = scmp.lt.s32.totalorder %s11, 3
      %p142 = pnand %p140, %p141
      %p143 = pneg %p142
      // Predicated region
      $region25: #{attention_mask.1} parent=5 // pred_check
        _
      $region26: #{attention_mask.1} parent=5 // pred_check_branch
        %145 = sbr.rel (%p142) target = $region28
      $region27: #{attention_mask.1} parent=5 // pred_region
        %s146 = ssub.s32 %s11, 1
        %p147 = scmp.lt.s32.totalorder %s20, 1
        %s148 = scalar_select %p147, %s20, 1
        %p149 = scmp.lt.s32.totalorder %s21, 0
        %s150 = scalar_select %p149, %s21, 0
        %s151 = sadd.s32 %s150, %s148
        %s152 = smul.addr %s151, 8
        %s153 = scalar_lea.vmem %s0, %s152
        %p154 = pneg %p51
        %p155 = pneg %p48
        %p156 = scmp.lt.s32.totalorder %s20, 1
        %s157 = scalar_select %p156, %s20, 1
        %s158 = scalar_lea.vmem %s1, %s157
        %p159 = pneg %p77
        %p160 = pneg %p74
        %p161 = pneg %p105
        %p162 = pneg %p102
        %s163 = sand.u32 %s92, 1
        %s164 = scalar_lea.sflag [#allocation3], %s163
        %s165 = sand.u32 %s92, 1
        %s166 = smul.addr %s165, 8
        %s167 = scalar_lea.vmem [#allocation2], %s166
        %p168 = scmp.lt.s32.totalorder %s20, 1
        %s169 = scalar_select %p168, %s20, 1
        %p170 = scmp.lt.s32.totalorder %s21, 0
        %s171 = scalar_select %p170, %s21, 0
        %s172 = sadd.s32 %s171, %s169
        %s173 = smul.addr %s172, 8
        %s174 = scalar_lea.vmem %s0, %s173
        %p175 = scmp.lt.s32.totalorder %s20, 1
        %s176 = scalar_select %p175, %s20, 1
        %s177 = scalar_lea.vmem %s1, %s176
        %v178 = vld [vmem:[%s174] sm:$0xff]
        %vm179 = vcmp.ne.s32.totalorder %v178, 0
        %v180 = vld [vmem:[%s177] sm:$0x1]
        %vm181 = vcmp.ne.s32.totalorder %v180, 0
        %v182 = vlaneseq
        %v183 = vshrl.u32 %v182, 7
        %s184 = smul.u32 %s21, 8
        %v185 = vstv %s184
        %v186 = vadd.s32 %v183, %v185
        %v187 = vlaneseq
        %v188 = vand.u32 %v187, 127
        %vm189 = vcmp.le.s32.totalorder %v188, %v186
        %v190 = vsel %vm179, 1, 0
        %191 = vset.pattern.permute.xlu0 0
        %192 = vperm.xlu0 %191, %v190
        %v193 = vpop.permute.xlu0 %192
        %vm194 = vcmp.eq.s32.totalorder %v193, 1
        %v195 = vsel %vm181, 1, 0
        %v196 = vperm.slane %v195, 0
        %vm197 = vcmp.eq.s32.totalorder %v196, 1
        %vm198 = vmand %vm194, %vm197
        %vm199 = vmand %vm198, %vm189
        %v200 = vsel %vm199, 1.0, 0.0
        %vm201 = vcmask 64512
        %202 = vst.msk [vmem:[%s167] sm:$0xff] %vm201, %v200
        %s203 = sand.u32 %s92, 1
        %s204 = scalar_lea.sflag [#allocation3], %s203
        %s205 = sand.u32 %s92, 1
        %s206 = smul.addr %s205, 8
        %s207 = scalar_lea.vmem [#allocation2], %s206
        // Predicated region
        $region29: #{attention_mask.1} parent=27 // pred_check
          %p208 = pneg %p102
        $region30: #{attention_mask.1} parent=27 // pred_check_branch
          %210 = sbr.rel (%p208) target = $region32
        $region31: #{attention_mask.1} parent=27 // pred_region
          %212 = vsyncadd %s204, 0
          %s213 = sadd.s32 %s21, %s20
          %s214 = smul.addr %s213, 8
          %s215 = scalar_lea.hbm %s2, %s214
          %s217 = sshll.u32 %s207, 4
          %s218 = int_to_ptr.vmem [resolvable:$true] %s217
          %s219 = sshll.u32 %s215, 4
          %s220 = int_to_ptr.hbm [resolvable:$true] %s219
          %222 = dma.vmem_to_hbm [thread:$0]  %s218, 128, %s220, %s204
        $region32: #{attention_mask.1} parent=27 // pred_fallthru
          _
      $region28: #{attention_mask.1} parent=5 // pred_fallthru
        _
      %p223 = scmp.le.s32.totalorder 2, %s11
      // Predicated region
      $region33: #{attention_mask.1} parent=5 // pred_check
        %p224 = pneg %p223
      $region34: #{attention_mask.1} parent=5 // pred_check_branch
        %226 = sbr.rel (%p224) target = $region36
      $region35: #{attention_mask.1} parent=5 // pred_region
        %s227 = ssub.s32 %s11, 2
        // Predicated region
        $region37: #{attention_mask.1} parent=35 // pred_check
          %p228 = pneg %p108
        $region38: #{attention_mask.1} parent=35 // pred_check_branch
          %230 = sbr.rel (%p228) target = $region40
        $region39: #{attention_mask.1} parent=35 // pred_region
          %s231 = sand.u32 %s93, 1
          %s232 = scalar_lea.sflag [#allocation3], %s231
          %s233 = sand.u32 %s93, 1
          %s234 = smul.addr %s233, 8
          %s235 = scalar_lea.vmem [#allocation2], %s234
          %237 = dma.done %s232, 128
        $region40: #{attention_mask.1} parent=35 // pred_fallthru
          _
      $region36: #{attention_mask.1} parent=5 // pred_fallthru
        _
    $region6: #{attention_mask.1} parent=1 // loop_footer
      %s15 = sadd.s32 1, %s11
    $region7: #{attention_mask.1} parent=1 // loop_footer_branch
      %10 = sbr.rel target = $region3
    $region8: #{attention_mask.1} parent=1 // loop_exit
      _
    %238 = vsyncpa [#allocation3], 1
    %s239 = scalar_lea.sflag [#allocation3], 1
    %240 = vsyncpa %s239, 1

</llo_original>
